<compile_context>
chip_gen: v7x
topology: tpu7x:2x2x1
jax: 0.10.0
libtpu: 0.0.40
codegen_flags: <defaults>
</compile_context>

<pallas_src>
import functools
import math

import jax
import jax.numpy as jnp
from jax import lax
from jax.experimental import pallas as pl
from jax.experimental.pallas import tpu as pltpu


def attention_block_kernel(
    x_ref,      # (1, S, E)  input block (f32)
    wqkv_ref,   # (E, 3E)    fused, pre-transposed QKV weight (Q cols pre-scaled)
    bqkv_ref,   # (1, 3E)    fused QKV bias (f32, Q part pre-scaled)
    wo_ref,     # (E, E)     pre-transposed out_proj weight (in, out)
    bo_ref,     # (1, E)     out_proj bias (f32)
    gamma_ref,  # (1, E)     LayerNorm weight (f32)
    beta_ref,   # (1, E)     LayerNorm bias (f32)
    o_ref,      # (1, S, E)  output block
    *,
    num_heads: int,
    compute_dtype,
    exp_dtype,
):
    _, S, E = x_ref.shape
    H = num_heads
    dh = E // H

    x = x_ref[0].astype(jnp.float32)                         # (S, E)
    xc = x.astype(compute_dtype)

    # Fused QKV projection: one wide full-K matmul, f32 accumulation.
    wqkv = wqkv_ref[...].astype(compute_dtype)
    qkv = jnp.dot(xc, wqkv, preferred_element_type=jnp.float32) + bqkv_ref[...]
    qkv_c = qkv.astype(compute_dtype)

    # Head-major (H, S, dh) operands: head index on a leading (non-lane) axis so
    # the attention core is one batched dot_general per stage instead of H small
    # K=dh matmuls.
    def heads(col0):
        return jnp.stack(
            [qkv_c[:, col0 + h * dh: col0 + (h + 1) * dh] for h in range(H)],
            axis=0)

    q = heads(0)            # (H, S, dh), already 1/sqrt(dh)-scaled
    k = heads(E)            # (H, S, dh)
    v = heads(2 * E)        # (H, S, dh)

    # scores[h] = q_h @ k_h^T  -> (H, S, S), f32 accumulate on the MXU.
    s = lax.dot_general(q, k, (((2,), (2,)), ((0,), (0,))),
                        preferred_element_type=jnp.float32)
    s = s - jnp.max(s, axis=-1, keepdims=True)

    # Softmax: exp in exp_dtype (bf16 on v6e/v7x -> EUP throughput), f32 denom.
    p = jnp.exp(s.astype(exp_dtype))
    l = jnp.sum(p.astype(jnp.float32), axis=-1, keepdims=True)     # (H, S, 1)

    # ctx[h] = p_h @ v_h -> (H, S, dh); normalization deferred to the (S, dh)
    # context via the (essentially free) EUP approx reciprocal.
    ctx = lax.dot_general(p.astype(compute_dtype), v,
                          (((2,), (1,)), ((0,), (0,))),
                          preferred_element_type=jnp.float32)
    ctx = ctx * pl.reciprocal(l, approx=True)

    # Concatenate heads back to (S, E) and run ONE full-K output projection.
    ctx_cat = jnp.concatenate([ctx[h] for h in range(H)], axis=-1)
    attn_out = jnp.dot(ctx_cat.astype(compute_dtype),
                       wo_ref[...].astype(compute_dtype),
                       preferred_element_type=jnp.float32) + bo_ref[...]

    # Residual + LayerNorm (eps = 1e-5, nn.LayerNorm default), all in f32.
    y = x + attn_out
    mean = jnp.mean(y, axis=-1, keepdims=True)
    var = jnp.mean((y - mean) ** 2, axis=-1, keepdims=True)
    y_norm = (y - mean) * lax.rsqrt(var + 1e-5)
    o_ref[0] = (y_norm * gamma_ref[...] + beta_ref[...]).astype(o_ref.dtype)


def attention_block(x, params, *, num_heads, compute_dtype=jnp.bfloat16,
                    exp_dtype=None):
    """x: (B, S, E) float32.  params: dict of PyTorch-layout weights (init_params)."""
    B, S, E = x.shape
    assert E % num_heads == 0
    dh = E // num_heads
    scale = 1.0 / math.sqrt(dh)
    w_dtype = jnp.dtype(compute_dtype)
    if exp_dtype is None:
        # bf16 exp keeps the single EUP slot from saturating on v6e/v7x.
        # On v5e (no bf16 EUP) pass exp_dtype=jnp.float32.
        exp_dtype = compute_dtype

    # ---- one-time parameter prep in the wrapper (never inside the kernel) ----
    # PyTorch Linear stores W as (out, in); pre-transpose to (in, out), fuse
    # Q/K/V, and fold the 1/sqrt(dh) scale into the Q columns / Q bias.
    wqkv = jnp.concatenate(
        [params["wq"].T * scale, params["wk"].T, params["wv"].T], axis=1
    ).astype(w_dtype)                                       # (E, 3E)
    bqkv = jnp.concatenate(
        [params["bq"] * scale, params["bk"], params["bv"]], axis=1
    ).astype(jnp.float32)                                   # (1, 3E)
    wo_t = params["wo"].T.astype(w_dtype)                   # (E, E)
    bo = params["bo"].astype(jnp.float32)
    gamma = params["gamma"].astype(jnp.float32)
    beta = params["beta"].astype(jnp.float32)

    # One batch row per grid step (no remainder, grid >= 2 whenever B >= 2).
    grid = (B,)

    kernel = functools.partial(
        attention_block_kernel, num_heads=num_heads,
        compute_dtype=compute_dtype, exp_dtype=exp_dtype)

    x_spec = pl.BlockSpec((1, S, E), lambda i: (i, 0, 0))
    in_specs = [
        x_spec,
        pl.BlockSpec((E, 3 * E), lambda i: (0, 0)),
        pl.BlockSpec((1, 3 * E), lambda i: (0, 0)),
        pl.BlockSpec((E, E), lambda i: (0, 0)),
        pl.BlockSpec((1, E), lambda i: (0, 0)),
        pl.BlockSpec((1, E), lambda i: (0, 0)),
        pl.BlockSpec((1, E), lambda i: (0, 0)),
    ]

    # ---- VMEM budget ----
    # Block I/O (double-buffered), weights (double-buffered by the pipeline even
    # though the index_map is constant), plus in-kernel intermediates (qkv slab,
    # head-major q/k/v copies, f32 scores + exp'd probs + compute-dtype copy,
    # ctx, concat/out-proj/LayerNorm temps), with ~25% headroom.
    H = num_heads
    wb = w_dtype.itemsize
    eb = jnp.dtype(exp_dtype).itemsize
    weight_bytes = (3 * E * E + E * E) * wb + (3 * E + 3 * E) * 4
    io_bytes = 2 * (2 * S * E * 4)                       # x in + out, 2 bufs each
    qkv_bytes = S * 3 * E * (4 + wb) + 3 * H * S * dh * wb
    score_bytes = H * S * S * (4 + eb + wb)
    ctx_bytes = H * S * dh * 4 + S * E * (4 + wb)
    misc_bytes = 4 * S * E * 4
    need = (2 * weight_bytes + io_bytes + qkv_bytes + score_bytes
            + ctx_bytes + misc_bytes)
    try:
        phys_vmem = pltpu.get_tpu_info().vmem_capacity_bytes
    except Exception:
        phys_vmem = 64 << 20                             # conservative (v7x) fallback
    vmem_limit = int(min(int(phys_vmem * 7 // 8),
                         max(32 << 20, int(need * 1.25))))

    cost = pl.CostEstimate(
        flops=int(8 * B * S * E * E + 4 * B * S * S * E),
        transcendentals=int(B * num_heads * S * S + B * S),
        bytes_accessed=int(2 * B * S * E * 4 + weight_bytes),
    )

    return pl.pallas_call(
        kernel,
        out_shape=jax.ShapeDtypeStruct((B, S, E), x.dtype),
        grid=grid,
        in_specs=in_specs,
        out_specs=x_spec,
        compiler_params=pltpu.CompilerParams(
            dimension_semantics=("parallel",),
            vmem_limit_bytes=vmem_limit),
        cost_estimate=cost,
    )(x, wqkv, bqkv, wo_t, bo, gamma, beta)


def init_params(key, embed_dim):
    """Synthetic init matching nn.MultiheadAttention shapes (PyTorch layout):
    Wq/Wk/Wv (E, E) rows of in_proj_weight, biases (1, E), out_proj (E, E)+(E,),
    LayerNorm gamma/beta (E,)."""
    E = embed_dim
    k = jax.random.split(key, 8)
    s = 1.0 / (E ** 0.5)
    return {
        "wq": jax.random.uniform(k[0], (E, E), jnp.float32, -s, s),
        "wk": jax.random.uniform(k[1], (E, E), jnp.float32, -s, s),
        "wv": jax.random.uniform(k[2], (E, E), jnp.float32, -s, s),
        "bq": jax.random.uniform(k[3], (1, E), jnp.float32, -s, s),
        "bk": jax.random.uniform(k[4], (1, E), jnp.float32, -s, s),
        "bv": jax.random.uniform(k[5], (1, E), jnp.float32, -s, s),
        "wo": jax.random.uniform(k[6], (E, E), jnp.float32, -s, s),
        "bo": jax.random.uniform(k[7], (1, E), jnp.float32, -s, s),
        "gamma": jnp.ones((1, E), jnp.float32),
        "beta": jnp.zeros((1, E), jnp.float32),
    }


def _reference(x, params, num_heads):
    """Pure-JAX reference of the PyTorch forward (eval mode)."""
    B, S, E = x.shape
    dh = E // num_heads
    q = x @ params["wq"].T + params["bq"]
    k = x @ params["wk"].T + params["bk"]
    v = x @ params["wv"].T + params["bv"]

    def split(t):  # (B, S, E) -> (B, H, S, dh)
        return t.reshape(B, S, num_heads, dh).transpose(0, 2, 1, 3)

    qh, kh, vh = split(q), split(k), split(v)
    scores = jnp.einsum("bhqd,bhkd->bhqk", qh, kh) / (dh ** 0.5)
    probs = jax.nn.softmax(scores, axis=-1)
    ctx = jnp.einsum("bhqk,bhkd->bhqd", probs, vh)
    ctx = ctx.transpose(0, 2, 1, 3).reshape(B, S, E)
    attn_out = ctx @ params["wo"].T + params["bo"]
    y = x + attn_out
    mean = y.mean(-1, keepdims=True)
    var = ((y - mean) ** 2).mean(-1, keepdims=True)
    return (y - mean) / jnp.sqrt(var + 1e-5) * params["gamma"] + params["beta"]


if __name__ == "__main__":
    B, S, E, H = 2, 8, 32, 4
    key = jax.random.PRNGKey(0)
    kx, kp = jax.random.split(key)
    x = jax.random.normal(kx, (B, S, E), jnp.float32)
    params = init_params(kp, E)

    ref = _reference(x, params, H)

    # Default path: bf16 MXU operands + bf16 exp (f32 accumulation, softmax
    # denominator and LayerNorm in f32) -> loose tolerance vs the f32 reference.
    out_bf16 = jax.block_until_ready(attention_block(x, params, num_heads=H))
    assert out_bf16.shape == (B, S, E)
    assert jnp.allclose(out_bf16, ref, atol=2e-1, rtol=2e-1), \
        float(jnp.abs(out_bf16 - ref).max())

    # f32 MXU-operand path (v5e-style): only the approx softmax-denominator
    # reciprocal deviates from the pure-f32 reference.
    out_f32 = jax.block_until_ready(
        attention_block(x, params, num_heads=H, compute_dtype=jnp.float32))
    assert jnp.allclose(out_f32, ref, atol=3e-2, rtol=3e-2), \
        float(jnp.abs(out_f32 - ref).max())

    print("KERNEL_OK")
</pallas_src>

<mosaic_0001>
module attributes {stable_mosaic.version = 11 : i64} {
  func.func @attention_block_kernel(%arg0: i32, %arg1: memref<1x8x32xf32, #tpu.memory_space<vmem>>, %arg2: memref<32x96xbf16, #tpu.memory_space<vmem>>, %arg3: memref<1x96xf32, #tpu.memory_space<vmem>>, %arg4: memref<32x32xbf16, #tpu.memory_space<vmem>>, %arg5: memref<1x32xf32, #tpu.memory_space<vmem>>, %arg6: memref<1x32xf32, #tpu.memory_space<vmem>>, %arg7: memref<1x32xf32, #tpu.memory_space<vmem>>, %arg8: memref<1x8x32xf32, #tpu.memory_space<vmem>>) attributes {dimension_semantics = [#tpu.dimension_semantics<parallel>], iteration_bounds = array<i64: 2>, scalar_prefetch = 0 : i64, scratch_operands = 0 : i64, tpu.core_type = #tpu.core_type<tc>, window_params = [{transform_indices = @transform_0, window_bounds = array<i64: 1, 8, 32>}, {pipeline_mode = #tpu.pipeline_mode<synchronous>, transform_indices = @transform_1, window_bounds = array<i64: 32, 96>}, {pipeline_mode = #tpu.pipeline_mode<synchronous>, transform_indices = @transform_2, window_bounds = array<i64: 1, 96>}, {pipeline_mode = #tpu.pipeline_mode<synchronous>, transform_indices = @transform_3, window_bounds = array<i64: 32, 32>}, {pipeline_mode = #tpu.pipeline_mode<synchronous>, transform_indices = @transform_4, window_bounds = array<i64: 1, 32>}, {pipeline_mode = #tpu.pipeline_mode<synchronous>, transform_indices = @transform_5, window_bounds = array<i64: 1, 32>}, {pipeline_mode = #tpu.pipeline_mode<synchronous>, transform_indices = @transform_6, window_bounds = array<i64: 1, 32>}, {transform_indices = @transform_7, window_bounds = array<i64: 1, 8, 32>}]} {
    %c0 = arith.constant 0 : index
    %c0_0 = arith.constant 0 : index
    %c0_1 = arith.constant 0 : index
    %0 = vector.load %arg1[%c0, %c0_0, %c0_1] : memref<1x8x32xf32, #tpu.memory_space<vmem>>, vector<1x8x32xf32>
    %1 = vector.shape_cast %0 : vector<1x8x32xf32> to vector<8x32xf32>
    %2 = arith.truncf %1 : vector<8x32xf32> to vector<8x32xbf16>
    %c0_2 = arith.constant 0 : index
    %c0_3 = arith.constant 0 : index
    %3 = vector.load %arg2[%c0_2, %c0_3] : memref<32x96xbf16, #tpu.memory_space<vmem>>, vector<32x96xbf16>
    %cst = arith.constant dense<0.000000e+00> : vector<8x96xf32>
    %4 = tpu.matmul %2, %3, %cst {dimension_numbers = #tpu.dot_dimension_numbers<[1], [0], [0], [1], [0, 0, 1, 1], [], []>} : vector<8x32xbf16>, vector<32x96xbf16>, vector<8x96xf32> -> vector<8x96xf32>
    %c0_4 = arith.constant 0 : index
    %c0_5 = arith.constant 0 : index
    %5 = vector.load %arg3[%c0_4, %c0_5] : memref<1x96xf32, #tpu.memory_space<vmem>>, vector<1x96xf32>
    %6 = vector.broadcast %5 : vector<1x96xf32> to vector<8x96xf32>
    %7 = arith.addf %4, %6 : vector<8x96xf32>
    %8 = arith.truncf %7 : vector<8x96xf32> to vector<8x96xbf16>
    %9 = vector.extract_strided_slice %8 {offsets = [0, 0], sizes = [8, 8], strides = [1, 1]} : vector<8x96xbf16> to vector<8x8xbf16>
    %10 = vector.extract_strided_slice %8 {offsets = [0, 8], sizes = [8, 8], strides = [1, 1]} : vector<8x96xbf16> to vector<8x8xbf16>
    %11 = vector.extract_strided_slice %8 {offsets = [0, 16], sizes = [8, 8], strides = [1, 1]} : vector<8x96xbf16> to vector<8x8xbf16>
    %12 = vector.extract_strided_slice %8 {offsets = [0, 24], sizes = [8, 8], strides = [1, 1]} : vector<8x96xbf16> to vector<8x8xbf16>
    %13 = vector.shape_cast %9 : vector<8x8xbf16> to vector<1x8x8xbf16>
    %14 = vector.shape_cast %10 : vector<8x8xbf16> to vector<1x8x8xbf16>
    %15 = vector.shape_cast %11 : vector<8x8xbf16> to vector<1x8x8xbf16>
    %16 = vector.shape_cast %12 : vector<8x8xbf16> to vector<1x8x8xbf16>
    %17 = tpu.concatenate %13, %14, %15, %16 in 0 : vector<1x8x8xbf16>, vector<1x8x8xbf16>, vector<1x8x8xbf16>, vector<1x8x8xbf16> -> vector<4x8x8xbf16>
    %18 = vector.extract_strided_slice %8 {offsets = [0, 32], sizes = [8, 8], strides = [1, 1]} : vector<8x96xbf16> to vector<8x8xbf16>
    %19 = vector.extract_strided_slice %8 {offsets = [0, 40], sizes = [8, 8], strides = [1, 1]} : vector<8x96xbf16> to vector<8x8xbf16>
    %20 = vector.extract_strided_slice %8 {offsets = [0, 48], sizes = [8, 8], strides = [1, 1]} : vector<8x96xbf16> to vector<8x8xbf16>
    %21 = vector.extract_strided_slice %8 {offsets = [0, 56], sizes = [8, 8], strides = [1, 1]} : vector<8x96xbf16> to vector<8x8xbf16>
    %22 = vector.shape_cast %18 : vector<8x8xbf16> to vector<1x8x8xbf16>
    %23 = vector.shape_cast %19 : vector<8x8xbf16> to vector<1x8x8xbf16>
    %24 = vector.shape_cast %20 : vector<8x8xbf16> to vector<1x8x8xbf16>
    %25 = vector.shape_cast %21 : vector<8x8xbf16> to vector<1x8x8xbf16>
    %26 = tpu.concatenate %22, %23, %24, %25 in 0 : vector<1x8x8xbf16>, vector<1x8x8xbf16>, vector<1x8x8xbf16>, vector<1x8x8xbf16> -> vector<4x8x8xbf16>
    %27 = vector.extract_strided_slice %8 {offsets = [0, 64], sizes = [8, 8], strides = [1, 1]} : vector<8x96xbf16> to vector<8x8xbf16>
    %28 = vector.extract_strided_slice %8 {offsets = [0, 72], sizes = [8, 8], strides = [1, 1]} : vector<8x96xbf16> to vector<8x8xbf16>
    %29 = vector.extract_strided_slice %8 {offsets = [0, 80], sizes = [8, 8], strides = [1, 1]} : vector<8x96xbf16> to vector<8x8xbf16>
    %30 = vector.extract_strided_slice %8 {offsets = [0, 88], sizes = [8, 8], strides = [1, 1]} : vector<8x96xbf16> to vector<8x8xbf16>
    %31 = vector.shape_cast %27 : vector<8x8xbf16> to vector<1x8x8xbf16>
    %32 = vector.shape_cast %28 : vector<8x8xbf16> to vector<1x8x8xbf16>
    %33 = vector.shape_cast %29 : vector<8x8xbf16> to vector<1x8x8xbf16>
    %34 = vector.shape_cast %30 : vector<8x8xbf16> to vector<1x8x8xbf16>
    %35 = tpu.concatenate %31, %32, %33, %34 in 0 : vector<1x8x8xbf16>, vector<1x8x8xbf16>, vector<1x8x8xbf16>, vector<1x8x8xbf16> -> vector<4x8x8xbf16>
    %cst_6 = arith.constant dense<0.000000e+00> : vector<4x8x8xf32>
    %36 = tpu.matmul %17, %26, %cst_6 {dimension_numbers = #tpu.dot_dimension_numbers<[2], [2], [1], [1], [0, 0, 0, 1, 1, 1], [0], [0]>} : vector<4x8x8xbf16>, vector<4x8x8xbf16>, vector<4x8x8xf32> -> vector<4x8x8xf32>
    %cst_7 = arith.constant dense<0xFF800000> : vector<4x8xf32>
    %37 = vector.multi_reduction <maximumf>, %36, %cst_7 [2] : vector<4x8x8xf32> to vector<4x8xf32>
    %38 = vector.shape_cast %37 : vector<4x8xf32> to vector<4x8x1xf32>
    %39 = vector.broadcast %38 : vector<4x8x1xf32> to vector<4x8x8xf32>
    %40 = arith.subf %36, %39 : vector<4x8x8xf32>
    %41 = arith.truncf %40 : vector<4x8x8xf32> to vector<4x8x8xbf16>
    %42 = math.exp %41 : vector<4x8x8xbf16>
    %43 = arith.extf %42 : vector<4x8x8xbf16> to vector<4x8x8xf32>
    %cst_8 = arith.constant dense<0.000000e+00> : vector<4x8xf32>
    %44 = vector.multi_reduction <add>, %43, %cst_8 [2] : vector<4x8x8xf32> to vector<4x8xf32>
    %45 = vector.shape_cast %44 : vector<4x8xf32> to vector<4x8x1xf32>
    %cst_9 = arith.constant dense<0.000000e+00> : vector<4x8x8xf32>
    %46 = tpu.matmul %42, %35, %cst_9 {dimension_numbers = #tpu.dot_dimension_numbers<[2], [1], [1], [2], [0, 0, 0, 1, 1, 2], [0], [0]>} : vector<4x8x8xbf16>, vector<4x8x8xbf16>, vector<4x8x8xf32> -> vector<4x8x8xf32>
    %47 = tpu.reciprocal %45 {approx = true} : vector<4x8x1xf32> -> vector<4x8x1xf32>
    %48 = vector.broadcast %47 : vector<4x8x1xf32> to vector<4x8x8xf32>
    %49 = arith.mulf %46, %48 : vector<4x8x8xf32>
    %50 = vector.extract_strided_slice %49 {offsets = [0, 0, 0], sizes = [1, 8, 8], strides = [1, 1, 1]} : vector<4x8x8xf32> to vector<1x8x8xf32>
    %51 = vector.shape_cast %50 : vector<1x8x8xf32> to vector<8x8xf32>
    %52 = vector.extract_strided_slice %49 {offsets = [1, 0, 0], sizes = [1, 8, 8], strides = [1, 1, 1]} : vector<4x8x8xf32> to vector<1x8x8xf32>
    %53 = vector.shape_cast %52 : vector<1x8x8xf32> to vector<8x8xf32>
    %54 = vector.extract_strided_slice %49 {offsets = [2, 0, 0], sizes = [1, 8, 8], strides = [1, 1, 1]} : vector<4x8x8xf32> to vector<1x8x8xf32>
    %55 = vector.shape_cast %54 : vector<1x8x8xf32> to vector<8x8xf32>
    %56 = vector.extract_strided_slice %49 {offsets = [3, 0, 0], sizes = [1, 8, 8], strides = [1, 1, 1]} : vector<4x8x8xf32> to vector<1x8x8xf32>
    %57 = vector.shape_cast %56 : vector<1x8x8xf32> to vector<8x8xf32>
    %58 = tpu.concatenate %51, %53, %55, %57 in 1 : vector<8x8xf32>, vector<8x8xf32>, vector<8x8xf32>, vector<8x8xf32> -> vector<8x32xf32>
    %59 = arith.truncf %58 : vector<8x32xf32> to vector<8x32xbf16>
    %c0_10 = arith.constant 0 : index
    %c0_11 = arith.constant 0 : index
    %60 = vector.load %arg4[%c0_10, %c0_11] : memref<32x32xbf16, #tpu.memory_space<vmem>>, vector<32x32xbf16>
    %cst_12 = arith.constant dense<0.000000e+00> : vector<8x32xf32>
    %61 = tpu.matmul %59, %60, %cst_12 {dimension_numbers = #tpu.dot_dimension_numbers<[1], [0], [0], [1], [0, 0, 1, 1], [], []>} : vector<8x32xbf16>, vector<32x32xbf16>, vector<8x32xf32> -> vector<8x32xf32>
    %c0_13 = arith.constant 0 : index
    %c0_14 = arith.constant 0 : index
    %62 = vector.load %arg5[%c0_13, %c0_14] : memref<1x32xf32, #tpu.memory_space<vmem>>, vector<1x32xf32>
    %63 = vector.broadcast %62 : vector<1x32xf32> to vector<8x32xf32>
    %64 = arith.addf %61, %63 : vector<8x32xf32>
    %65 = arith.addf %1, %64 : vector<8x32xf32>
    %cst_15 = arith.constant dense<0.000000e+00> : vector<8xf32>
    %66 = vector.multi_reduction <add>, %65, %cst_15 [1] : vector<8x32xf32> to vector<8xf32>
    %67 = vector.shape_cast %66 : vector<8xf32> to vector<8x1xf32>
    %cst_16 = arith.constant 3.200000e+01 : f32
    %68 = vector.broadcast %cst_16 : f32 to vector<8x1xf32>
    %69 = arith.divf %67, %68 : vector<8x1xf32>
    %70 = vector.broadcast %69 : vector<8x1xf32> to vector<8x32xf32>
    %71 = arith.subf %65, %70 : vector<8x32xf32>
    %72 = arith.mulf %71, %71 : vector<8x32xf32>
    %cst_17 = arith.constant dense<0.000000e+00> : vector<8xf32>
    %73 = vector.multi_reduction <add>, %72, %cst_17 [1] : vector<8x32xf32> to vector<8xf32>
    %74 = vector.shape_cast %73 : vector<8xf32> to vector<8x1xf32>
    %cst_18 = arith.constant 3.200000e+01 : f32
    %75 = vector.broadcast %cst_18 : f32 to vector<8x1xf32>
    %76 = arith.divf %74, %75 : vector<8x1xf32>
    %77 = vector.broadcast %69 : vector<8x1xf32> to vector<8x32xf32>
    %78 = arith.subf %65, %77 : vector<8x32xf32>
    %cst_19 = arith.constant 9.99999974E-6 : f32
    %79 = vector.broadcast %cst_19 : f32 to vector<8x1xf32>
    %80 = arith.addf %76, %79 : vector<8x1xf32>
    %81 = math.rsqrt %80 : vector<8x1xf32>
    %82 = vector.broadcast %81 : vector<8x1xf32> to vector<8x32xf32>
    %83 = arith.mulf %78, %82 : vector<8x32xf32>
    %c0_20 = arith.constant 0 : index
    %c0_21 = arith.constant 0 : index
    %84 = vector.load %arg6[%c0_20, %c0_21] : memref<1x32xf32, #tpu.memory_space<vmem>>, vector<1x32xf32>
    %85 = vector.broadcast %84 : vector<1x32xf32> to vector<8x32xf32>
    %86 = arith.mulf %83, %85 : vector<8x32xf32>
    %c0_22 = arith.constant 0 : index
    %c0_23 = arith.constant 0 : index
    %87 = vector.load %arg7[%c0_22, %c0_23] : memref<1x32xf32, #tpu.memory_space<vmem>>, vector<1x32xf32>
    %88 = vector.broadcast %87 : vector<1x32xf32> to vector<8x32xf32>
    %89 = arith.addf %86, %88 : vector<8x32xf32>
    %c0_24 = arith.constant 0 : index
    %c0_25 = arith.constant 0 : index
    %c0_26 = arith.constant 0 : index
    %90 = vector.load %arg8[%c0_24, %c0_25, %c0_26] : memref<1x8x32xf32, #tpu.memory_space<vmem>>, vector<1x8x32xf32>
    %91 = vector.shape_cast %90 : vector<1x8x32xf32> to vector<8x32xf32>
    %92 = vector.shape_cast %89 : vector<8x32xf32> to vector<1x8x32xf32>
    tpu.vector_store %arg8[%c0_24, %c0_25, %c0_26], %92 {strides = array<i32>} : memref<1x8x32xf32, #tpu.memory_space<vmem>>, vector<1x8x32xf32>,
    return
  }
  func.func @transform_0(%arg0: i32) -> (i32, i32, i32) {
    %c0_i32 = arith.constant 0 : i32
    %c0_i32_0 = arith.constant 0 : i32
    %c0_i32_1 = arith.constant 0 : i32
    return %arg0, %c0_i32, %c0_i32_0 : i32, i32, i32
  }
  func.func @transform_1(%arg0: i32) -> (i32, i32) {
    %c0_i32 = arith.constant 0 : i32
    %c0_i32_0 = arith.constant 0 : i32
    %c0_i32_1 = arith.constant 0 : i32
    return %c0_i32, %c0_i32_0 : i32, i32
  }
  func.func @transform_2(%arg0: i32) -> (i32, i32) {
    %c0_i32 = arith.constant 0 : i32
    %c0_i32_0 = arith.constant 0 : i32
    %c0_i32_1 = arith.constant 0 : i32
    return %c0_i32, %c0_i32_0 : i32, i32
  }
  func.func @transform_3(%arg0: i32) -> (i32, i32) {
    %c0_i32 = arith.constant 0 : i32
    %c0_i32_0 = arith.constant 0 : i32
    %c0_i32_1 = arith.constant 0 : i32
    return %c0_i32, %c0_i32_0 : i32, i32
  }
  func.func @transform_4(%arg0: i32) -> (i32, i32) {
    %c0_i32 = arith.constant 0 : i32
    %c0_i32_0 = arith.constant 0 : i32
    %c0_i32_1 = arith.constant 0 : i32
    return %c0_i32, %c0_i32_0 : i32, i32
  }
  func.func @transform_5(%arg0: i32) -> (i32, i32) {
    %c0_i32 = arith.constant 0 : i32
    %c0_i32_0 = arith.constant 0 : i32
    %c0_i32_1 = arith.constant 0 : i32
    return %c0_i32, %c0_i32_0 : i32, i32
  }
  func.func @transform_6(%arg0: i32) -> (i32, i32) {
    %c0_i32 = arith.constant 0 : i32
    %c0_i32_0 = arith.constant 0 : i32
    %c0_i32_1 = arith.constant 0 : i32
    return %c0_i32, %c0_i32_0 : i32, i32
  }
  func.func @transform_7(%arg0: i32) -> (i32, i32, i32) {
    %c0_i32 = arith.constant 0 : i32
    %c0_i32_0 = arith.constant 0 : i32
    %c0_i32_1 = arith.constant 0 : i32
    return %arg0, %c0_i32, %c0_i32_0 : i32, i32, i32
  }
}

</mosaic_0001>

<llo_original>
// kernel: tpu_custom_call.1
$region0: #{tpu_custom_call.1}
  #allocation0 [shape = 'u32[]', space=smem, size = 0x4, offset = 0x4, fixed_abs, tag = 'smem constant byte address 0x4 - core index']
  #allocation1 [shape = 'u32[144,128]{1,0:T(1,128)}', space=vmem, size = 0x12000, scoped, tag = 'internal scratch']
  %s0 = inlined_call_operand.hbm [shape: f32[2,8,32], index: 0, kind: input, shape index: {}]
  %s1 = inlined_call_operand.hbm [shape: bf16[32,96], index: 1, kind: input, shape index: {}]
  %s2 = inlined_call_operand.vmem [shape: f32[1,96], index: 2, kind: input, shape index: {}]
  %s3 = inlined_call_operand.hbm [shape: bf16[32,32], index: 3, kind: input, shape index: {}]
  %s4 = inlined_call_operand.vmem [shape: f32[1,32], index: 4, kind: input, shape index: {}]
  %s5 = inlined_call_operand.vmem [shape: f32[1,32], index: 5, kind: input, shape index: {}]
  %s6 = inlined_call_operand.vmem [shape: f32[1,32], index: 6, kind: input, shape index: {}]
  %s7 = inlined_call_operand.hbm [shape: f32[2,8,32], index: 7, kind: output, shape index: {}]
  %s8 = sld [smem:[#allocation0]]
  $region73: #{tpu_custom_call.1} parent=0
    _
  %s10 = ssub.s32 1, %s8
  %s11 = scalar_select 0, %s10, %s8
  $region1: #{tpu_custom_call.1} parent=0
    #allocation2 [shape = 'u8[8192]{0}', space=vmem, size = 0x2000, scoped, tag = 'input window, operand 0']
    #allocation3 [shape = 's32[2]{0}', space=sflag, size = 0x8, scoped, tag = 'scoped memory for tpu_custom_call.1']
    #allocation4 [shape = 's32[2]{0}', space=sflag, size = 0x8, scoped, tag = 'scoped memory for tpu_custom_call.1']
    #allocation5 [shape = 'u8[8192]{0}', space=vmem, size = 0x2000, scoped, tag = 'input window, operand 1, single buffered']
    #allocation6 [shape = 's32[1]{0}', space=sflag, size = 0x4, scoped, tag = 'scoped memory for tpu_custom_call.1']
    #allocation7 [shape = 'u8[8192]{0}', space=vmem, size = 0x2000, scoped, tag = 'input window, operand 3, single buffered']
    #allocation8 [shape = 'u8[8192]{0}', space=vmem, size = 0x2000, scoped, tag = 'output window, operand 0']
    %12 = vsyncpa [#allocation3], 0
    %s13 = scalar_lea.sflag [#allocation3], 1
    %14 = vsyncpa %s13, 0
    %15 = vsyncpa [#allocation6], 0
    %16 = vsyncpa [#allocation4], 0
    %s17 = scalar_lea.sflag [#allocation4], 1
    %18 = vsyncpa %s17, 0
    loop: start=0, step=1, limit=4
    $region2: #{tpu_custom_call.1} parent=1 // loop_pre_header
      _
    $region3: #{tpu_custom_call.1} parent=1 // loop_header
      %s20 = sphi 0, %s24
      %p21 = scmp.ge.s32.totalorder %s20, 4
      %s30 = sphi 0, %s32
      %s33 = sphi 0, %s30
      %s34 = sphi 0, %s33
      %s50 = sphi 0, %s34
      %s54 = sphi 0, %s54
      %s56 = sphi 0, %s54
      %s57 = sphi 0, %s56
      %s71 = sphi 0, %s57
      %s75 = sphi 0, %s75
      %s77 = sphi 0, %s75
      %s78 = sphi 0, %s77
      %s92 = sphi 0, %s78
      %s96 = sphi 0, %s96
      %s98 = sphi 0, %s96
      %s99 = sphi 0, %s98
      %s113 = sphi 0, %s99
      %s117 = sphi 0, %s117
      %s119 = sphi 0, %s117
      %s120 = sphi 0, %s119
      %s134 = sphi 0, %s120
      %s138 = sphi 0, %s138
      %s140 = sphi 0, %s138
      %s141 = sphi 0, %s140
      %s155 = sphi 0, %s141
      %s159 = sphi 0, %s159
      %s161 = sphi 0, %s159
      %s162 = sphi 0, %s161
      %s176 = sphi 0, %s162
      %s182 = sphi 0, %s184
      %s185 = sphi 0, %s182
      %s186 = sphi 0, %s185
      %s202 = sphi 0, %s186
    $region4: #{tpu_custom_call.1} parent=1 // loop_header_branch
      %23 = sbr.rel (%p21) target = $region8
    $region5: #{tpu_custom_call.1} parent=1 // loop_body
      %s25 = ssub.s32 %s20, 1
      %s26 = ssub.s32 %s20, 2
      %s27 = sadd.s32 %s20, 1
      %s28 = ssub.s32 %s20, %s27
      %p29 = scmp.eq.s32.totalorder %s28, 0
      %s31 = sadd.s32 %s30, 1
      %s32 = scalar_select %p29, %s30, %s31
      %p35 = pneg %p29
      %p36 = scmp.eq.s32.totalorder %s20, 1
      %p37 = por %p35, %p36
      %p38 = scmp.ne.s32.totalorder %s30, %s33
      %p39 = scmp.eq.s32.totalorder %s20, 0
      %p40 = por %p38, %p39
      %p41 = scmp.ne.s32.totalorder %s30, %s33
      %p42 = scmp.eq.s32.totalorder %s25, 1
      %p43 = por %p41, %p42
      %p44 = scmp.ne.s32.totalorder %s33, %s34
      %p45 = scmp.eq.s32.totalorder %s25, 0
      %p46 = por %p44, %p45
      %p47 = scmp.ne.s32.totalorder %s33, %s34
      %p48 = scmp.eq.s32.totalorder %s26, 1
      %p49 = por %p47, %p48
      %p51 = scmp.ne.s32.totalorder %s34, %s50
      %p52 = scmp.eq.s32.totalorder %s26, 0
      %p53 = por %p51, %p52
      %s55 = sadd.s32 %s54, 1
      %p58 = scmp.eq.s32.totalorder %s20, 1
      %p59 = scmp.ne.s32.totalorder %s54, %s56
      %p60 = scmp.eq.s32.totalorder %s20, 0
      %p61 = por %p59, %p60
      %p62 = scmp.ne.s32.totalorder %s54, %s56
      %p63 = scmp.eq.s32.totalorder %s25, 1
      %p64 = por %p62, %p63
      %p65 = scmp.ne.s32.totalorder %s56, %s57
      %p66 = scmp.eq.s32.totalorder %s25, 0
      %p67 = por %p65, %p66
      %p68 = scmp.ne.s32.totalorder %s56, %s57
      %p69 = scmp.eq.s32.totalorder %s26, 1
      %p70 = por %p68, %p69
      %p72 = scmp.ne.s32.totalorder %s57, %s71
      %p73 = scmp.eq.s32.totalorder %s26, 0
      %p74 = por %p72, %p73
      %s76 = sadd.s32 %s75, 1
      %p79 = scmp.eq.s32.totalorder %s20, 1
      %p80 = scmp.ne.s32.totalorder %s75, %s77
      %p81 = scmp.eq.s32.totalorder %s20, 0
      %p82 = por %p80, %p81
      %p83 = scmp.ne.s32.totalorder %s75, %s77
      %p84 = scmp.eq.s32.totalorder %s25, 1
      %p85 = por %p83, %p84
      %p86 = scmp.ne.s32.totalorder %s77, %s78
      %p87 = scmp.eq.s32.totalorder %s25, 0
      %p88 = por %p86, %p87
      %p89 = scmp.ne.s32.totalorder %s77, %s78
      %p90 = scmp.eq.s32.totalorder %s26, 1
      %p91 = por %p89, %p90
      %p93 = scmp.ne.s32.totalorder %s78, %s92
      %p94 = scmp.eq.s32.totalorder %s26, 0
      %p95 = por %p93, %p94
      %s97 = sadd.s32 %s96, 1
      %p100 = scmp.eq.s32.totalorder %s20, 1
      %p101 = scmp.ne.s32.totalorder %s96, %s98
      %p102 = scmp.eq.s32.totalorder %s20, 0
      %p103 = por %p101, %p102
      %p104 = scmp.ne.s32.totalorder %s96, %s98
      %p105 = scmp.eq.s32.totalorder %s25, 1
      %p106 = por %p104, %p105
      %p107 = scmp.ne.s32.totalorder %s98, %s99
      %p108 = scmp.eq.s32.totalorder %s25, 0
      %p109 = por %p107, %p108
      %p110 = scmp.ne.s32.totalorder %s98, %s99
      %p111 = scmp.eq.s32.totalorder %s26, 1
      %p112 = por %p110, %p111
      %p114 = scmp.ne.s32.totalorder %s99, %s113
      %p115 = scmp.eq.s32.totalorder %s26, 0
      %p116 = por %p114, %p115
      %s118 = sadd.s32 %s117, 1
      %p121 = scmp.eq.s32.totalorder %s20, 1
      %p122 = scmp.ne.s32.totalorder %s117, %s119
      %p123 = scmp.eq.s32.totalorder %s20, 0
      %p124 = por %p122, %p123
      %p125 = scmp.ne.s32.totalorder %s117, %s119
      %p126 = scmp.eq.s32.totalorder %s25, 1
      %p127 = por %p125, %p126
      %p128 = scmp.ne.s32.totalorder %s119, %s120
      %p129 = scmp.eq.s32.totalorder %s25, 0
      %p130 = por %p128, %p129
      %p131 = scmp.ne.s32.totalorder %s119, %s120
      %p132 = scmp.eq.s32.totalorder %s26, 1
      %p133 = por %p131, %p132
      %p135 = scmp.ne.s32.totalorder %s120, %s134
      %p136 = scmp.eq.s32.totalorder %s26, 0
      %p137 = por %p135, %p136
      %s139 = sadd.s32 %s138, 1
      %p142 = scmp.eq.s32.totalorder %s20, 1
      %p143 = scmp.ne.s32.totalorder %s138, %s140
      %p144 = scmp.eq.s32.totalorder %s20, 0
      %p145 = por %p143, %p144
      %p146 = scmp.ne.s32.totalorder %s138, %s140
      %p147 = scmp.eq.s32.totalorder %s25, 1
      %p148 = por %p146, %p147
      %p149 = scmp.ne.s32.totalorder %s140, %s141
      %p150 = scmp.eq.s32.totalorder %s25, 0
      %p151 = por %p149, %p150
      %p152 = scmp.ne.s32.totalorder %s140, %s141
      %p153 = scmp.eq.s32.totalorder %s26, 1
      %p154 = por %p152, %p153
      %p156 = scmp.ne.s32.totalorder %s141, %s155
      %p157 = scmp.eq.s32.totalorder %s26, 0
      %p158 = por %p156, %p157
      %s160 = sadd.s32 %s159, 1
      %p163 = scmp.eq.s32.totalorder %s20, 1
      %p164 = scmp.ne.s32.totalorder %s159, %s161
      %p165 = scmp.eq.s32.totalorder %s20, 0
      %p166 = por %p164, %p165
      %p167 = scmp.ne.s32.totalorder %s159, %s161
      %p168 = scmp.eq.s32.totalorder %s25, 1
      %p169 = por %p167, %p168
      %p170 = scmp.ne.s32.totalorder %s161, %s162
      %p171 = scmp.eq.s32.totalorder %s25, 0
      %p172 = por %p170, %p171
      %p173 = scmp.ne.s32.totalorder %s161, %s162
      %p174 = scmp.eq.s32.totalorder %s26, 1
      %p175 = por %p173, %p174
      %p177 = scmp.ne.s32.totalorder %s162, %s176
      %p178 = scmp.eq.s32.totalorder %s26, 0
      %p179 = por %p177, %p178
      %s180 = ssub.s32 %s20, %s27
      %p181 = scmp.eq.s32.totalorder %s180, 0
      %s183 = sadd.s32 %s182, 1
      %s184 = scalar_select %p181, %s182, %s183
      %p187 = pneg %p181
      %p188 = scmp.eq.s32.totalorder %s20, 1
      %p189 = por %p187, %p188
      %p190 = scmp.ne.s32.totalorder %s182, %s185
      %p191 = scmp.eq.s32.totalorder %s20, 0
      %p192 = por %p190, %p191
      %p193 = scmp.ne.s32.totalorder %s182, %s185
      %p194 = scmp.eq.s32.totalorder %s25, 1
      %p195 = por %p193, %p194
      %p196 = scmp.ne.s32.totalorder %s185, %s186
      %p197 = scmp.eq.s32.totalorder %s25, 0
      %p198 = por %p196, %p197
      %p199 = scmp.ne.s32.totalorder %s185, %s186
      %p200 = scmp.eq.s32.totalorder %s26, 1
      %p201 = por %p199, %p200
      %p203 = scmp.ne.s32.totalorder %s186, %s202
      %p204 = scmp.eq.s32.totalorder %s26, 0
      %p205 = por %p203, %p204
      %p206 = scmp.le.s32.totalorder 1, %s20
      %p207 = scmp.lt.s32.totalorder %s20, 3
      %p208 = pnand %p206, %p207
      %p209 = pneg %p208
      // Predicated region
      $region9: #{tpu_custom_call.1} parent=5 // pred_check
        _
      $region10: #{tpu_custom_call.1} parent=5 // pred_check_branch
        %211 = sbr.rel (%p208) target = $region12
      $region11: #{tpu_custom_call.1} parent=5 // pred_region
        %s212 = ssub.s32 %s20, 1
        // Predicated region
        $region13: #{tpu_custom_call.1} parent=11 // pred_check
          %p213 = pneg %p67
        $region14: #{tpu_custom_call.1} parent=11 // pred_check_branch
          %215 = sbr.rel (%p213) target = $region16
        $region15: #{tpu_custom_call.1} parent=11 // pred_region
          %s217 = ssub.s32 256, 256
          %218 = vsyncadd [#allocation6], %s217
          %s219 = sshll.u32 [#allocation5], 4
          %s220 = int_to_ptr.vmem [resolvable:$true] %s219
          %225 = dma.hbm_to_vmem [thread:$0]  %s1, 256, %s220, [#allocation6], 64, 64, 4
        $region16: #{tpu_custom_call.1} parent=11 // pred_fallthru
          _
        // Predicated region
        $region17: #{tpu_custom_call.1} parent=11 // pred_check
          %p226 = pneg %p88
        $region18: #{tpu_custom_call.1} parent=11 // pred_check_branch
          %228 = sbr.rel (%p226) target = $region20
        $region19: #{tpu_custom_call.1} parent=11 // pred_region
          _
        $region20: #{tpu_custom_call.1} parent=11 // pred_fallthru
          _
        // Predicated region
        $region21: #{tpu_custom_call.1} parent=11 // pred_check
          %p229 = pneg %p109
        $region22: #{tpu_custom_call.1} parent=11 // pred_check_branch
          %231 = sbr.rel (%p229) target = $region24
        $region23: #{tpu_custom_call.1} parent=11 // pred_region
          %s233 = ssub.s32 256, 256
          %234 = vsyncadd [#allocation6], %s233
          %s235 = sshll.u32 [#allocation7], 4
          %s236 = int_to_ptr.vmem [resolvable:$true] %s235
          %241 = dma.hbm_to_vmem [thread:$0]  %s3, 256, %s236, [#allocation6], 64, 64, 4
        $region24: #{tpu_custom_call.1} parent=11 // pred_fallthru
          _
        // Predicated region
        $region25: #{tpu_custom_call.1} parent=11 // pred_check
          %p242 = pneg %p130
        $region26: #{tpu_custom_call.1} parent=11 // pred_check_branch
          %244 = sbr.rel (%p242) target = $region28
        $region27: #{tpu_custom_call.1} parent=11 // pred_region
          _
        $region28: #{tpu_custom_call.1} parent=11 // pred_fallthru
          _
        // Predicated region
        $region29: #{tpu_custom_call.1} parent=11 // pred_check
          %p245 = pneg %p151
        $region30: #{tpu_custom_call.1} parent=11 // pred_check_branch
          %247 = sbr.rel (%p245) target = $region32
        $region31: #{tpu_custom_call.1} parent=11 // pred_region
          _
        $region32: #{tpu_custom_call.1} parent=11 // pred_fallthru
          _
        // Predicated region
        $region33: #{tpu_custom_call.1} parent=11 // pred_check
          %p248 = pneg %p172
        $region34: #{tpu_custom_call.1} parent=11 // pred_check_branch
          %250 = sbr.rel (%p248) target = $region36
        $region35: #{tpu_custom_call.1} parent=11 // pred_region
          _
        $region36: #{tpu_custom_call.1} parent=11 // pred_fallthru
          _
      $region12: #{tpu_custom_call.1} parent=5 // pred_fallthru
        _
      %p251 = scmp.lt.s32.totalorder %s20, 2
      // Predicated region
      $region37: #{tpu_custom_call.1} parent=5 // pred_check
        %p252 = pneg %p251
      $region38: #{tpu_custom_call.1} parent=5 // pred_check_branch
        %254 = sbr.rel (%p252) target = $region40
      $region39: #{tpu_custom_call.1} parent=5 // pred_region
        // Predicated region
        $region41: #{tpu_custom_call.1} parent=39 // pred_check
          %p255 = pneg %p40
        $region42: #{tpu_custom_call.1} parent=39 // pred_check_branch
          %257 = sbr.rel (%p255) target = $region44
        $region43: #{tpu_custom_call.1} parent=39 // pred_region
          %s258 = sand.u32 %s30, 1
          %s259 = scalar_lea.sflag [#allocation3], %s258
          %s260 = sand.u32 %s30, 1
          %s261 = smul.addr %s260, 8
          %s262 = scalar_lea.vmem [#allocation2], %s261
          %s264 = ssub.s32 128, 128
          %265 = vsyncadd %s259, %s264
          %s266 = smul.addr %s20, 128
          %s267 = scalar_lea.hbm %s0, %s266
          %s269 = sshll.u32 %s262, 4
          %s270 = int_to_ptr.vmem [resolvable:$true] %s269
          %272 = dma.hbm_to_vmem [thread:$0]  %s267, 128, %s270, %s259
        $region44: #{tpu_custom_call.1} parent=39 // pred_fallthru
          _
      $region40: #{tpu_custom_call.1} parent=5 // pred_fallthru
        _
      %p273 = scmp.le.s32.totalorder 1, %s20
      %p274 = scmp.lt.s32.totalorder %s20, 3
      %p275 = pnand %p273, %p274
      %p276 = pneg %p275
      // Predicated region
      $region45: #{tpu_custom_call.1} parent=5 // pred_check
        _
      $region46: #{tpu_custom_call.1} parent=5 // pred_check_branch
        %278 = sbr.rel (%p275) target = $region48
      $region47: #{tpu_custom_call.1} parent=5 // pred_region
        %s279 = ssub.s32 %s20, 1
        %s280 = sand.u32 %s33, 1
        %s281 = scalar_lea.sflag [#allocation3], %s280
        %s282 = sand.u32 %s33, 1
        %s283 = smul.addr %s282, 8
        %s284 = scalar_lea.vmem [#allocation2], %s283
        // Predicated region
        $region49: #{tpu_custom_call.1} parent=47 // pred_check
          %p285 = pneg %p46
        $region50: #{tpu_custom_call.1} parent=47 // pred_check_branch
          %287 = sbr.rel (%p285) target = $region52
        $region51: #{tpu_custom_call.1} parent=47 // pred_region
          %288 = dma.done %s281, 128
        $region52: #{tpu_custom_call.1} parent=47 // pred_fallthru
          _
        // Predicated region
        $region53: #{tpu_custom_call.1} parent=47 // pred_check
          %p289 = pneg %p67
        $region54: #{tpu_custom_call.1} parent=47 // pred_check_branch
          %291 = sbr.rel (%p289) target = $region56
        $region55: #{tpu_custom_call.1} parent=47 // pred_region
          %292 = dma.done [#allocation6], 256
        $region56: #{tpu_custom_call.1} parent=47 // pred_fallthru
          _
        // Predicated region
        $region57: #{tpu_custom_call.1} parent=47 // pred_check
          %p293 = pneg %p109
        $region58: #{tpu_custom_call.1} parent=47 // pred_check_branch
          %295 = sbr.rel (%p293) target = $region60
        $region59: #{tpu_custom_call.1} parent=47 // pred_region
          %296 = dma.done [#allocation6], 256
        $region60: #{tpu_custom_call.1} parent=47 // pred_fallthru
          _
        %s297 = sand.u32 %s33, 1
        %s298 = scalar_lea.sflag [#allocation3], %s297
        %s299 = sand.u32 %s33, 1
        %s300 = smul.addr %s299, 8
        %s301 = scalar_lea.vmem [#allocation2], %s300
        %p302 = pneg %p46
        %p303 = pneg %p43
        %p304 = pneg %p67
        %p305 = pneg %p64
        %p306 = pneg %p88
        %p307 = pneg %p85
        %p308 = pneg %p109
        %p309 = pneg %p106
        %p310 = pneg %p130
        %p311 = pneg %p127
        %p312 = pneg %p151
        %p313 = pneg %p148
        %p314 = pneg %p172
        %p315 = pneg %p169
        %p316 = pneg %p198
        %p317 = pneg %p195
        %s318 = sand.u32 %s185, 1
        %s319 = scalar_lea.sflag [#allocation4], %s318
        %s320 = sand.u32 %s185, 1
        %s321 = smul.addr %s320, 8
        %s322 = scalar_lea.vmem [#allocation8], %s321
        %v324 = vld [vmem:[%s284] sm:$0xff]
        %v325 = vpack.c.bf16 %v324, %v324
        %v326 = vld [vmem:[#allocation5] sm:$0xf]
        %v327 = vld [vmem:[#allocation5 + $0x4] sm:$0xf]
        %v328 = vld [vmem:[#allocation5 + $0x8] sm:$0xf]
        %v329 = vld [vmem:[#allocation5 + $0xc] sm:$0xf]
        %v330 = vld [vmem:[%s2] sm:$0x1]
        %v332 = vlaneseq
        %v333 = vshrl.u32 %v332, 7
        %v334 = vsub.s32 0, %v333
        %v335 = vrot.slane %v330, %v334
        %v341 = vunpack.c.l.b16 %v326
        %v342 = vunpack.c.l.b16 %v327
        %v343 = vunpack.c.l.b16 %v328
        %v344 = vunpack.c.l.b16 %v329
        %v345 = vpack.c.b16 %v342, %v341
        %v346 = vpack.c.b16 %v344, %v343
        %vm349 = vcmask 261120
        %v351 = vsel %vm349, %v325, 0
        %353 = vmatprep.subr.bf16.mxu0 0
        %354 = vmatpush1.bf16.msra.mxu0 %v345
        %355 = vmatprep.subr.bf16.mxu0 0
        %356 = vmatpush1.bf16.msra.mxu0 %v346
        %357 = vmatprep.subr.bf16.mxu0 0
        %358 = vmatpush1.bf16.msra.mxu0 0
        %359 = vmatprep.subr.bf16.mxu0 0
        %360 = vmatpush1.bf16.msra.mxu0 0
        %361 = vmatprep.subr.bf16.mxu0 0
        %362 = vmatpush1.bf16.msra.mxu0 0
        %363 = vmatprep.subr.bf16.mxu0 0
        %364 = vmatpush1.bf16.msra.mxu0 0
        %365 = vmatprep.subr.bf16.mxu0 0
        %366 = vmatpush1.bf16.msra.mxu0 0
        %367 = vmatprep.subr.bf16.mxu0 0
        %368 = vmatpush1.bf16.msra.mxu0 0
        %369 = vmatprep.subr.bf16.mxu0 0
        %370 = vmatpush1.bf16.msra.mxu0 0
        %371 = vmatprep.subr.bf16.mxu0 0
        %372 = vmatpush1.bf16.msra.mxu0 0
        %373 = vmatprep.subr.bf16.mxu0 0
        %374 = vmatpush1.bf16.msra.mxu0 0
        %375 = vmatprep.subr.bf16.mxu0 0
        %376 = vmatpush1.bf16.msra.mxu0 0
        %377 = vmatprep.subr.bf16.mxu0 0
        %378 = vmatpush1.bf16.msra.mxu0 0
        %379 = vmatprep.subr.bf16.mxu0 0
        %380 = vmatpush1.bf16.msra.mxu0 0
        %381 = vmatprep.subr.bf16.mxu0 0
        %382 = vmatpush1.bf16.msra.mxu0 0
        %383 = vmatprep.subr.bf16.mxu0 0
        %384 = vmatpush1.bf16.msra.mxu0 0
        %385 = vmatprep.mubr.bf16.mxu0 0
        %386 = vmatmul.mubr.bf16.gmra.mrb[0].mxu0 %v351
        %v387 = vpop.f32.mrb[0].mxu0
        %v388 = vadd.f32 %v335, %v387
        %v389 = vpop.f32.mrb[0].mxu0
        %v390 = vpop.f32.mrb[0].mxu0
        %v391 = vpop.f32.mrb[0].mxu0
        %392 = vdwg.mxu0
        %v393 = vpack.c.bf16 %v388, %v388
        %395 = vrot.lane.b32.xlu0 %v393, 120
        %v396 = vpop.permute.xlu0 %395
        %397 = vrot.lane.b32.xlu0 %v393, 112
        %v398 = vpop.permute.xlu0 %397
        %399 = vrot.lane.b32.xlu0 %v393, 104
        %v400 = vpop.permute.xlu0 %399
        %401 = vrot.lane.b32.xlu0 %v393, 96
        %v402 = vpop.permute.xlu0 %401
        %vm403 = vcmask 64512
        %v405 = vsel %vm403, %v393, 0
        %v408 = vsel %vm403, %v402, 0
        %410 = vmatprep.subr.bf16.mxu0 0
        %411 = vmatpush1.bf16.xpose.msra.mxu0 %v408
        %412 = vmatprep.subr.bf16.mxu0 0
        %413 = vmatpush1.bf16.xpose.msra.mxu0 0
        %414 = vmatprep.subr.bf16.mxu0 0
        %415 = vmatpush1.bf16.xpose.msra.mxu0 0
        %416 = vmatprep.subr.bf16.mxu0 0
        %417 = vmatpush1.bf16.xpose.msra.mxu0 0
        %418 = vmatprep.subr.bf16.mxu0 0
        %419 = vmatpush1.bf16.xpose.msra.mxu0 0
        %420 = vmatprep.subr.bf16.mxu0 0
        %421 = vmatpush1.bf16.xpose.msra.mxu0 0
        %422 = vmatprep.subr.bf16.mxu0 0
        %423 = vmatpush1.bf16.xpose.msra.mxu0 0
        %424 = vmatprep.subr.bf16.mxu0 0
        %425 = vmatpush1.bf16.xpose.msra.mxu0 0
        %426 = vmatprep.subr.bf16.mxu0 0
        %427 = vmatpush1.bf16.xpose.msra.mxu0 0
        %428 = vmatprep.subr.bf16.mxu0 0
        %429 = vmatpush1.bf16.xpose.msra.mxu0 0
        %430 = vmatprep.subr.bf16.mxu0 0
        %431 = vmatpush1.bf16.xpose.msra.mxu0 0
        %432 = vmatprep.subr.bf16.mxu0 0
        %433 = vmatpush1.bf16.xpose.msra.mxu0 0
        %434 = vmatprep.subr.bf16.mxu0 0
        %435 = vmatpush1.bf16.xpose.msra.mxu0 0
        %436 = vmatprep.subr.bf16.mxu0 0
        %437 = vmatpush1.bf16.xpose.msra.mxu0 0
        %438 = vmatprep.subr.bf16.mxu0 0
        %439 = vmatpush1.bf16.xpose.msra.mxu0 0
        %440 = vmatprep.subr.bf16.mxu0 0
        %441 = vmatpush1.bf16.xpose.msra.mxu0 0
        %442 = vmatprep.mubr.bf16.mxu0 0
        %443 = vmatmul.mubr.bf16.gmra.mrb[0].mxu0 %v405
        %v444 = vpop.f32.mrb[0].mxu0
        %v445 = vadd.f32 0.0, %v444
        %v446 = vpop.f32.mrb[0].mxu0
        %v447 = vpop.f32.mrb[0].mxu0
        %v448 = vpop.f32.mrb[0].mxu0
        %449 = vdwg.mxu0
        %450 = vrot.lane.b32.xlu0 %v396, 96
        %v451 = vpop.permute.xlu0 %450
        %v453 = vsel %vm403, %v396, 0
        %v456 = vsel %vm403, %v451, 0
        %458 = vmatprep.subr.bf16.mxu0 0
        %459 = vmatpush1.bf16.xpose.msra.mxu0 %v456
        %460 = vmatprep.subr.bf16.mxu0 0
        %461 = vmatpush1.bf16.xpose.msra.mxu0 0
        %462 = vmatprep.subr.bf16.mxu0 0
        %463 = vmatpush1.bf16.xpose.msra.mxu0 0
        %464 = vmatprep.subr.bf16.mxu0 0
        %465 = vmatpush1.bf16.xpose.msra.mxu0 0
        %466 = vmatprep.subr.bf16.mxu0 0
        %467 = vmatpush1.bf16.xpose.msra.mxu0 0
        %468 = vmatprep.subr.bf16.mxu0 0
        %469 = vmatpush1.bf16.xpose.msra.mxu0 0
        %470 = vmatprep.subr.bf16.mxu0 0
        %471 = vmatpush1.bf16.xpose.msra.mxu0 0
        %472 = vmatprep.subr.bf16.mxu0 0
        %473 = vmatpush1.bf16.xpose.msra.mxu0 0
        %474 = vmatprep.subr.bf16.mxu0 0
        %475 = vmatpush1.bf16.xpose.msra.mxu0 0
        %476 = vmatprep.subr.bf16.mxu0 0
        %477 = vmatpush1.bf16.xpose.msra.mxu0 0
        %478 = vmatprep.subr.bf16.mxu0 0
        %479 = vmatpush1.bf16.xpose.msra.mxu0 0
        %480 = vmatprep.subr.bf16.mxu0 0
        %481 = vmatpush1.bf16.xpose.msra.mxu0 0
        %482 = vmatprep.subr.bf16.mxu0 0
        %483 = vmatpush1.bf16.xpose.msra.mxu0 0
        %484 = vmatprep.subr.bf16.mxu0 0
        %485 = vmatpush1.bf16.xpose.msra.mxu0 0
        %486 = vmatprep.subr.bf16.mxu0 0
        %487 = vmatpush1.bf16.xpose.msra.mxu0 0
        %488 = vmatprep.subr.bf16.mxu0 0
        %489 = vmatpush1.bf16.xpose.msra.mxu0 0
        %490 = vmatprep.mubr.bf16.mxu0 0
        %491 = vmatmul.mubr.bf16.gmra.mrb[0].mxu0 %v453
        %v492 = vpop.f32.mrb[0].mxu0
        %v493 = vadd.f32 0.0, %v492
        %v494 = vpop.f32.mrb[0].mxu0
        %v495 = vpop.f32.mrb[0].mxu0
        %v496 = vpop.f32.mrb[0].mxu0
        %497 = vdwg.mxu0
        %498 = vrot.lane.b32.xlu0 %v398, 96
        %v499 = vpop.permute.xlu0 %498
        %v501 = vsel %vm403, %v398, 0
        %v504 = vsel %vm403, %v499, 0
        %506 = vmatprep.subr.bf16.mxu0 0
        %507 = vmatpush1.bf16.xpose.msra.mxu0 %v504
        %508 = vmatprep.subr.bf16.mxu0 0
        %509 = vmatpush1.bf16.xpose.msra.mxu0 0
        %510 = vmatprep.subr.bf16.mxu0 0
        %511 = vmatpush1.bf16.xpose.msra.mxu0 0
        %512 = vmatprep.subr.bf16.mxu0 0
        %513 = vmatpush1.bf16.xpose.msra.mxu0 0
        %514 = vmatprep.subr.bf16.mxu0 0
        %515 = vmatpush1.bf16.xpose.msra.mxu0 0
        %516 = vmatprep.subr.bf16.mxu0 0
        %517 = vmatpush1.bf16.xpose.msra.mxu0 0
        %518 = vmatprep.subr.bf16.mxu0 0
        %519 = vmatpush1.bf16.xpose.msra.mxu0 0
        %520 = vmatprep.subr.bf16.mxu0 0
        %521 = vmatpush1.bf16.xpose.msra.mxu0 0
        %522 = vmatprep.subr.bf16.mxu0 0
        %523 = vmatpush1.bf16.xpose.msra.mxu0 0
        %524 = vmatprep.subr.bf16.mxu0 0
        %525 = vmatpush1.bf16.xpose.msra.mxu0 0
        %526 = vmatprep.subr.bf16.mxu0 0
        %527 = vmatpush1.bf16.xpose.msra.mxu0 0
        %528 = vmatprep.subr.bf16.mxu0 0
        %529 = vmatpush1.bf16.xpose.msra.mxu0 0
        %530 = vmatprep.subr.bf16.mxu0 0
        %531 = vmatpush1.bf16.xpose.msra.mxu0 0
        %532 = vmatprep.subr.bf16.mxu0 0
        %533 = vmatpush1.bf16.xpose.msra.mxu0 0
        %534 = vmatprep.subr.bf16.mxu0 0
        %535 = vmatpush1.bf16.xpose.msra.mxu0 0
        %536 = vmatprep.subr.bf16.mxu0 0
        %537 = vmatpush1.bf16.xpose.msra.mxu0 0
        %538 = vmatprep.mubr.bf16.mxu0 0
        %539 = vmatmul.mubr.bf16.gmra.mrb[0].mxu0 %v501
        %v540 = vpop.f32.mrb[0].mxu0
        %v541 = vadd.f32 0.0, %v540
        %v542 = vpop.f32.mrb[0].mxu0
        %v543 = vpop.f32.mrb[0].mxu0
        %v544 = vpop.f32.mrb[0].mxu0
        %545 = vdwg.mxu0
        %546 = vrot.lane.b32.xlu0 %v400, 96
        %v547 = vpop.permute.xlu0 %546
        %v549 = vsel %vm403, %v400, 0
        %v552 = vsel %vm403, %v547, 0
        %554 = vmatprep.subr.bf16.mxu0 0
        %555 = vmatpush1.bf16.xpose.msra.mxu0 %v552
        %556 = vmatprep.subr.bf16.mxu0 0
        %557 = vmatpush1.bf16.xpose.msra.mxu0 0
        %558 = vmatprep.subr.bf16.mxu0 0
        %559 = vmatpush1.bf16.xpose.msra.mxu0 0
        %560 = vmatprep.subr.bf16.mxu0 0
        %561 = vmatpush1.bf16.xpose.msra.mxu0 0
        %562 = vmatprep.subr.bf16.mxu0 0
        %563 = vmatpush1.bf16.xpose.msra.mxu0 0
        %564 = vmatprep.subr.bf16.mxu0 0
        %565 = vmatpush1.bf16.xpose.msra.mxu0 0
        %566 = vmatprep.subr.bf16.mxu0 0
        %567 = vmatpush1.bf16.xpose.msra.mxu0 0
        %568 = vmatprep.subr.bf16.mxu0 0
        %569 = vmatpush1.bf16.xpose.msra.mxu0 0
        %570 = vmatprep.subr.bf16.mxu0 0
        %571 = vmatpush1.bf16.xpose.msra.mxu0 0
        %572 = vmatprep.subr.bf16.mxu0 0
        %573 = vmatpush1.bf16.xpose.msra.mxu0 0
        %574 = vmatprep.subr.bf16.mxu0 0
        %575 = vmatpush1.bf16.xpose.msra.mxu0 0
        %576 = vmatprep.subr.bf16.mxu0 0
        %577 = vmatpush1.bf16.xpose.msra.mxu0 0
        %578 = vmatprep.subr.bf16.mxu0 0
        %579 = vmatpush1.bf16.xpose.msra.mxu0 0
        %580 = vmatprep.subr.bf16.mxu0 0
        %581 = vmatpush1.bf16.xpose.msra.mxu0 0
        %582 = vmatprep.subr.bf16.mxu0 0
        %583 = vmatpush1.bf16.xpose.msra.mxu0 0
        %584 = vmatprep.subr.bf16.mxu0 0
        %585 = vmatpush1.bf16.xpose.msra.mxu0 0
        %586 = vmatprep.mubr.bf16.mxu0 0
        %587 = vmatmul.mubr.bf16.gmra.mrb[0].mxu0 %v549
        %v588 = vpop.f32.mrb[0].mxu0
        %v589 = vadd.f32 0.0, %v588
        %v590 = vpop.f32.mrb[0].mxu0
        %v591 = vpop.f32.mrb[0].mxu0
        %v592 = vpop.f32.mrb[0].mxu0
        %593 = vdwg.mxu0
        %v594 = vsel %vm403, %v445, -inf
        %595 = vmax.xlane.f32.xlu0 %v594
        %v596 = vpop.xlane.xlu0 %595
        %v597 = vsel %vm403, %v493, -inf
        %598 = vmax.xlane.f32.xlu0 %v597
        %v599 = vpop.xlane.xlu0 %598
        %v600 = vsel %vm403, %v541, -inf
        %601 = vmax.xlane.f32.xlu0 %v600
        %v602 = vpop.xlane.xlu0 %601
        %v603 = vsel %vm403, %v589, -inf
        %604 = vmax.xlane.f32.xlu0 %v603
        %v605 = vpop.xlane.xlu0 %604
        %v606 = vsub.f32 %v445, %v596
        %v607 = vsub.f32 %v493, %v599
        %v608 = vsub.f32 %v541, %v602
        %v609 = vsub.f32 %v589, %v605
        %v610 = vpack.c.bf16 %v606, %v606
        %v611 = vpack.c.bf16 %v607, %v607
        %v612 = vpack.c.bf16 %v608, %v608
        %v613 = vpack.c.bf16 %v609, %v609
        %v615 = vmul.bf16 %v610, 1069105081
        %v616 = vpow.bf16.pop %v615
        %v618 = vmul.bf16 %v611, 1069105081
        %v619 = vpow.bf16.pop %v618
        %v621 = vmul.bf16 %v612, 1069105081
        %v622 = vpow.bf16.pop %v621
        %v624 = vmul.bf16 %v613, 1069105081
        %v625 = vpow.bf16.pop %v624
        %v626 = vunpack.c.l.bf16 %v616
        %v627 = vunpack.c.l.bf16 %v619
        %v628 = vunpack.c.l.bf16 %v622
        %v629 = vunpack.c.l.bf16 %v625
        %v630 = vsel %vm403, %v626, 0.0
        %631 = vadd.xlane.f32.xlu0 %v630
        %v632 = vpop.xlane.xlu0 %631
        %v633 = vsel %vm403, %v627, 0.0
        %634 = vadd.xlane.f32.xlu0 %v633
        %v635 = vpop.xlane.xlu0 %634
        %v636 = vsel %vm403, %v628, 0.0
        %637 = vadd.xlane.f32.xlu0 %v636
        %v638 = vpop.xlane.xlu0 %637
        %v639 = vsel %vm403, %v629, 0.0
        %640 = vadd.xlane.f32.xlu0 %v639
        %v641 = vpop.xlane.xlu0 %640
        %642 = vrot.lane.b32.xlu0 %v393, 64
        %v643 = vpop.permute.xlu0 %642
        %v645 = vsel %vm403, %v616, 0
        %vm647 = vcmask 1043456
        %v649 = vsel %vm647, %v643, 0
        %651 = vmatprep.subr.bf16.mxu0 0
        %652 = vmatpush1.bf16.msra.mxu0 %v649
        %653 = vmatprep.subr.bf16.mxu0 0
        %654 = vmatpush1.bf16.msra.mxu0 0
        %655 = vmatprep.subr.bf16.mxu0 0
        %656 = vmatpush1.bf16.msra.mxu0 0
        %657 = vmatprep.subr.bf16.mxu0 0
        %658 = vmatpush1.bf16.msra.mxu0 0
        %659 = vmatprep.subr.bf16.mxu0 0
        %660 = vmatpush1.bf16.msra.mxu0 0
        %661 = vmatprep.subr.bf16.mxu0 0
        %662 = vmatpush1.bf16.msra.mxu0 0
        %663 = vmatprep.subr.bf16.mxu0 0
        %664 = vmatpush1.bf16.msra.mxu0 0
        %665 = vmatprep.subr.bf16.mxu0 0
        %666 = vmatpush1.bf16.msra.mxu0 0
        %667 = vmatprep.subr.bf16.mxu0 0
        %668 = vmatpush1.bf16.msra.mxu0 0
        %669 = vmatprep.subr.bf16.mxu0 0
        %670 = vmatpush1.bf16.msra.mxu0 0
        %671 = vmatprep.subr.bf16.mxu0 0
        %672 = vmatpush1.bf16.msra.mxu0 0
        %673 = vmatprep.subr.bf16.mxu0 0
        %674 = vmatpush1.bf16.msra.mxu0 0
        %675 = vmatprep.subr.bf16.mxu0 0
        %676 = vmatpush1.bf16.msra.mxu0 0
        %677 = vmatprep.subr.bf16.mxu0 0
        %678 = vmatpush1.bf16.msra.mxu0 0
        %679 = vmatprep.subr.bf16.mxu0 0
        %680 = vmatpush1.bf16.msra.mxu0 0
        %681 = vmatprep.subr.bf16.mxu0 0
        %682 = vmatpush1.bf16.msra.mxu0 0
        %683 = vmatprep.mubr.bf16.mxu0 0
        %684 = vmatmul.mubr.bf16.gmra.mrb[0].mxu0 %v645
        %v685 = vpop.f32.mrb[0].mxu0
        %v686 = vadd.f32 0.0, %v685
        %v687 = vpop.f32.mrb[0].mxu0
        %v688 = vpop.f32.mrb[0].mxu0
        %v689 = vpop.f32.mrb[0].mxu0
        %690 = vdwg.mxu0
        %691 = vrot.lane.b32.xlu0 %v396, 64
        %v692 = vpop.permute.xlu0 %691
        %v694 = vsel %vm403, %v619, 0
        %v697 = vsel %vm647, %v692, 0
        %699 = vmatprep.subr.bf16.mxu0 0
        %700 = vmatpush1.bf16.msra.mxu0 %v697
        %701 = vmatprep.subr.bf16.mxu0 0
        %702 = vmatpush1.bf16.msra.mxu0 0
        %703 = vmatprep.subr.bf16.mxu0 0
        %704 = vmatpush1.bf16.msra.mxu0 0
        %705 = vmatprep.subr.bf16.mxu0 0
        %706 = vmatpush1.bf16.msra.mxu0 0
        %707 = vmatprep.subr.bf16.mxu0 0
        %708 = vmatpush1.bf16.msra.mxu0 0
        %709 = vmatprep.subr.bf16.mxu0 0
        %710 = vmatpush1.bf16.msra.mxu0 0
        %711 = vmatprep.subr.bf16.mxu0 0
        %712 = vmatpush1.bf16.msra.mxu0 0
        %713 = vmatprep.subr.bf16.mxu0 0
        %714 = vmatpush1.bf16.msra.mxu0 0
        %715 = vmatprep.subr.bf16.mxu0 0
        %716 = vmatpush1.bf16.msra.mxu0 0
        %717 = vmatprep.subr.bf16.mxu0 0
        %718 = vmatpush1.bf16.msra.mxu0 0
        %719 = vmatprep.subr.bf16.mxu0 0
        %720 = vmatpush1.bf16.msra.mxu0 0
        %721 = vmatprep.subr.bf16.mxu0 0
        %722 = vmatpush1.bf16.msra.mxu0 0
        %723 = vmatprep.subr.bf16.mxu0 0
        %724 = vmatpush1.bf16.msra.mxu0 0
        %725 = vmatprep.subr.bf16.mxu0 0
        %726 = vmatpush1.bf16.msra.mxu0 0
        %727 = vmatprep.subr.bf16.mxu0 0
        %728 = vmatpush1.bf16.msra.mxu0 0
        %729 = vmatprep.subr.bf16.mxu0 0
        %730 = vmatpush1.bf16.msra.mxu0 0
        %731 = vmatprep.mubr.bf16.mxu0 0
        %732 = vmatmul.mubr.bf16.gmra.mrb[0].mxu0 %v694
        %v733 = vpop.f32.mrb[0].mxu0
        %v734 = vadd.f32 0.0, %v733
        %v735 = vpop.f32.mrb[0].mxu0
        %v736 = vpop.f32.mrb[0].mxu0
        %v737 = vpop.f32.mrb[0].mxu0
        %738 = vdwg.mxu0
        %739 = vrot.lane.b32.xlu0 %v398, 64
        %v740 = vpop.permute.xlu0 %739
        %v742 = vsel %vm403, %v622, 0
        %v745 = vsel %vm647, %v740, 0
        %747 = vmatprep.subr.bf16.mxu0 0
        %748 = vmatpush1.bf16.msra.mxu0 %v745
        %749 = vmatprep.subr.bf16.mxu0 0
        %750 = vmatpush1.bf16.msra.mxu0 0
        %751 = vmatprep.subr.bf16.mxu0 0
        %752 = vmatpush1.bf16.msra.mxu0 0
        %753 = vmatprep.subr.bf16.mxu0 0
        %754 = vmatpush1.bf16.msra.mxu0 0
        %755 = vmatprep.subr.bf16.mxu0 0
        %756 = vmatpush1.bf16.msra.mxu0 0
        %757 = vmatprep.subr.bf16.mxu0 0
        %758 = vmatpush1.bf16.msra.mxu0 0
        %759 = vmatprep.subr.bf16.mxu0 0
        %760 = vmatpush1.bf16.msra.mxu0 0
        %761 = vmatprep.subr.bf16.mxu0 0
        %762 = vmatpush1.bf16.msra.mxu0 0
        %763 = vmatprep.subr.bf16.mxu0 0
        %764 = vmatpush1.bf16.msra.mxu0 0
        %765 = vmatprep.subr.bf16.mxu0 0
        %766 = vmatpush1.bf16.msra.mxu0 0
        %767 = vmatprep.subr.bf16.mxu0 0
        %768 = vmatpush1.bf16.msra.mxu0 0
        %769 = vmatprep.subr.bf16.mxu0 0
        %770 = vmatpush1.bf16.msra.mxu0 0
        %771 = vmatprep.subr.bf16.mxu0 0
        %772 = vmatpush1.bf16.msra.mxu0 0
        %773 = vmatprep.subr.bf16.mxu0 0
        %774 = vmatpush1.bf16.msra.mxu0 0
        %775 = vmatprep.subr.bf16.mxu0 0
        %776 = vmatpush1.bf16.msra.mxu0 0
        %777 = vmatprep.subr.bf16.mxu0 0
        %778 = vmatpush1.bf16.msra.mxu0 0
        %779 = vmatprep.mubr.bf16.mxu0 0
        %780 = vmatmul.mubr.bf16.gmra.mrb[0].mxu0 %v742
        %v781 = vpop.f32.mrb[0].mxu0
        %v782 = vadd.f32 0.0, %v781
        %v783 = vpop.f32.mrb[0].mxu0
        %v784 = vpop.f32.mrb[0].mxu0
        %v785 = vpop.f32.mrb[0].mxu0
        %786 = vdwg.mxu0
        %787 = vrot.lane.b32.xlu0 %v400, 64
        %v788 = vpop.permute.xlu0 %787
        %v790 = vsel %vm403, %v625, 0
        %v793 = vsel %vm647, %v788, 0
        %795 = vmatprep.subr.bf16.mxu0 0
        %796 = vmatpush1.bf16.msra.mxu0 %v793
        %797 = vmatprep.subr.bf16.mxu0 0
        %798 = vmatpush1.bf16.msra.mxu0 0
        %799 = vmatprep.subr.bf16.mxu0 0
        %800 = vmatpush1.bf16.msra.mxu0 0
        %801 = vmatprep.subr.bf16.mxu0 0
        %802 = vmatpush1.bf16.msra.mxu0 0
        %803 = vmatprep.subr.bf16.mxu0 0
        %804 = vmatpush1.bf16.msra.mxu0 0
        %805 = vmatprep.subr.bf16.mxu0 0
        %806 = vmatpush1.bf16.msra.mxu0 0
        %807 = vmatprep.subr.bf16.mxu0 0
        %808 = vmatpush1.bf16.msra.mxu0 0
        %809 = vmatprep.subr.bf16.mxu0 0
        %810 = vmatpush1.bf16.msra.mxu0 0
        %811 = vmatprep.subr.bf16.mxu0 0
        %812 = vmatpush1.bf16.msra.mxu0 0
        %813 = vmatprep.subr.bf16.mxu0 0
        %814 = vmatpush1.bf16.msra.mxu0 0
        %815 = vmatprep.subr.bf16.mxu0 0
        %816 = vmatpush1.bf16.msra.mxu0 0
        %817 = vmatprep.subr.bf16.mxu0 0
        %818 = vmatpush1.bf16.msra.mxu0 0
        %819 = vmatprep.subr.bf16.mxu0 0
        %820 = vmatpush1.bf16.msra.mxu0 0
        %821 = vmatprep.subr.bf16.mxu0 0
        %822 = vmatpush1.bf16.msra.mxu0 0
        %823 = vmatprep.subr.bf16.mxu0 0
        %824 = vmatpush1.bf16.msra.mxu0 0
        %825 = vmatprep.subr.bf16.mxu0 0
        %826 = vmatpush1.bf16.msra.mxu0 0
        %827 = vmatprep.mubr.bf16.mxu0 0
        %828 = vmatmul.mubr.bf16.gmra.mrb[0].mxu0 %v790
        %v829 = vpop.f32.mrb[0].mxu0
        %v830 = vadd.f32 0.0, %v829
        %v831 = vpop.f32.mrb[0].mxu0
        %v832 = vpop.f32.mrb[0].mxu0
        %v833 = vpop.f32.mrb[0].mxu0
        %834 = vdwg.mxu0
        %v835 = vrcp.pop %v632
        %v836 = vrcp.pop %v635
        %v837 = vrcp.pop %v638
        %v838 = vrcp.pop %v641
        %v839 = vmul.f32 %v686, %v835
        %v840 = vmul.f32 %v734, %v836
        %v841 = vmul.f32 %v782, %v837
        %v842 = vmul.f32 %v830, %v838
        %844 = vrot.lane.b32.xlu0 %v840, 8
        %v845 = vpop.permute.xlu0 %844
        %848 = vrot.lane.b32.xlu0 %v841, 16
        %v849 = vpop.permute.xlu0 %848
        %852 = vrot.lane.b32.xlu0 %v842, 24
        %v853 = vpop.permute.xlu0 %852
        %v855 = vsel %vm403, %v839, %v845
        %vm856 = vcmask 130048
        %v857 = vsel %vm856, %v855, %v849
        %vm858 = vcmask 195584
        %v859 = vsel %vm858, %v857, %v853
        %v860 = vpack.c.bf16 %v859, %v859
        %v861 = vld [vmem:[#allocation7] sm:$0xf]
        %v862 = vld [vmem:[#allocation7 + $0x4] sm:$0xf]
        %v863 = vld [vmem:[#allocation7 + $0x8] sm:$0xf]
        %v864 = vld [vmem:[#allocation7 + $0xc] sm:$0xf]
        %v865 = vld [vmem:[%s4] sm:$0x1]
        %v867 = vlaneseq
        %v868 = vshrl.u32 %v867, 7
        %v869 = vsub.s32 0, %v868
        %v870 = vrot.slane %v865, %v869
        %v876 = vunpack.c.l.b16 %v861
        %v877 = vunpack.c.l.b16 %v862
        %v878 = vunpack.c.l.b16 %v863
        %v879 = vunpack.c.l.b16 %v864
        %v880 = vpack.c.b16 %v877, %v876
        %v881 = vpack.c.b16 %v879, %v878
        %v885 = vsel %vm349, %v860, 0
        %887 = vmatprep.subr.bf16.mxu0 0
        %888 = vmatpush1.bf16.msra.mxu0 %v880
        %889 = vmatprep.subr.bf16.mxu0 0
        %890 = vmatpush1.bf16.msra.mxu0 %v881
        %891 = vmatprep.subr.bf16.mxu0 0
        %892 = vmatpush1.bf16.msra.mxu0 0
        %893 = vmatprep.subr.bf16.mxu0 0
        %894 = vmatpush1.bf16.msra.mxu0 0
        %895 = vmatprep.subr.bf16.mxu0 0
        %896 = vmatpush1.bf16.msra.mxu0 0
        %897 = vmatprep.subr.bf16.mxu0 0
        %898 = vmatpush1.bf16.msra.mxu0 0
        %899 = vmatprep.subr.bf16.mxu0 0
        %900 = vmatpush1.bf16.msra.mxu0 0
        %901 = vmatprep.subr.bf16.mxu0 0
        %902 = vmatpush1.bf16.msra.mxu0 0
        %903 = vmatprep.subr.bf16.mxu0 0
        %904 = vmatpush1.bf16.msra.mxu0 0
        %905 = vmatprep.subr.bf16.mxu0 0
        %906 = vmatpush1.bf16.msra.mxu0 0
        %907 = vmatprep.subr.bf16.mxu0 0
        %908 = vmatpush1.bf16.msra.mxu0 0
        %909 = vmatprep.subr.bf16.mxu0 0
        %910 = vmatpush1.bf16.msra.mxu0 0
        %911 = vmatprep.subr.bf16.mxu0 0
        %912 = vmatpush1.bf16.msra.mxu0 0
        %913 = vmatprep.subr.bf16.mxu0 0
        %914 = vmatpush1.bf16.msra.mxu0 0
        %915 = vmatprep.subr.bf16.mxu0 0
        %916 = vmatpush1.bf16.msra.mxu0 0
        %917 = vmatprep.subr.bf16.mxu0 0
        %918 = vmatpush1.bf16.msra.mxu0 0
        %919 = vmatprep.mubr.bf16.mxu0 0
        %920 = vmatmul.mubr.bf16.gmra.mrb[0].mxu0 %v885
        %v921 = vpop.f32.mrb[0].mxu0
        %v922 = vadd.f32 %v870, %v921
        %v923 = vpop.f32.mrb[0].mxu0
        %v924 = vpop.f32.mrb[0].mxu0
        %v925 = vpop.f32.mrb[0].mxu0
        %926 = vdwg.mxu0
        %v927 = vadd.f32 %v324, %v922
        %v928 = vsel %vm349, %v927, 0.0
        %929 = vadd.xlane.f32.xlu0 %v928
        %v930 = vpop.xlane.xlu0 %929
        %v931 = vrcp.pop 32.0
        %v932 = vmul.f32 %v930, %v931
        %v933 = vsub.f32 %v927, %v932
        %v934 = vmul.f32 %v933, %v933
        %v935 = vsel %vm349, %v934, 0.0
        %936 = vadd.xlane.f32.xlu0 %v935
        %v937 = vpop.xlane.xlu0 %936
        %v938 = vmul.f32 %v937, %v931
        %v939 = vadd.f32 %v938, 1e-05
        %v940 = vrsqrt.pop %v939
        %v941 = vmul.f32 %v933, %v940
        %v942 = vld [vmem:[%s5] sm:$0x1]
        %v944 = vlaneseq
        %v945 = vshrl.u32 %v944, 7
        %v946 = vsub.s32 0, %v945
        %v947 = vrot.slane %v942, %v946
        %v949 = vmul.f32 %v941, %v947
        %v950 = vld [vmem:[%s6] sm:$0x1]
        %v952 = vlaneseq
        %v953 = vshrl.u32 %v952, 7
        %v954 = vsub.s32 0, %v953
        %v955 = vrot.slane %v950, %v954
        %v957 = vadd.f32 %v949, %v955
        %958 = vst.msk [vmem:[%s322] sm:$0xff] %vm349, %v957
        %s959 = sand.u32 %s185, 1
        %s960 = scalar_lea.sflag [#allocation4], %s959
        %s961 = sand.u32 %s185, 1
        %s962 = smul.addr %s961, 8
        %s963 = scalar_lea.vmem [#allocation8], %s962
        // Predicated region
        $region61: #{tpu_custom_call.1} parent=47 // pred_check
          %p964 = pneg %p195
        $region62: #{tpu_custom_call.1} parent=47 // pred_check_branch
          %966 = sbr.rel (%p964) target = $region64
        $region63: #{tpu_custom_call.1} parent=47 // pred_region
          %s968 = ssub.s32 128, 128
          %969 = vsyncadd %s960, %s968
          %s970 = smul.addr %s25, 128
          %s971 = scalar_lea.hbm %s7, %s970
          %s973 = sshll.u32 %s963, 4
          %s974 = int_to_ptr.vmem [resolvable:$true] %s973
          %976 = dma.vmem_to_hbm [thread:$0]  %s974, 128, %s971, %s960
        $region64: #{tpu_custom_call.1} parent=47 // pred_fallthru
          _
      $region48: #{tpu_custom_call.1} parent=5 // pred_fallthru
        _
      %p977 = scmp.le.s32.totalorder 2, %s20
      // Predicated region
      $region65: #{tpu_custom_call.1} parent=5 // pred_check
        %p978 = pneg %p977
      $region66: #{tpu_custom_call.1} parent=5 // pred_check_branch
        %980 = sbr.rel (%p978) target = $region68
      $region67: #{tpu_custom_call.1} parent=5 // pred_region
        %s981 = ssub.s32 %s20, 2
        // Predicated region
        $region69: #{tpu_custom_call.1} parent=67 // pred_check
          %p982 = pneg %p201
        $region70: #{tpu_custom_call.1} parent=67 // pred_check_branch
          %984 = sbr.rel (%p982) target = $region72
        $region71: #{tpu_custom_call.1} parent=67 // pred_region
          %s985 = sand.u32 %s186, 1
          %s986 = scalar_lea.sflag [#allocation4], %s985
          %s987 = sand.u32 %s186, 1
          %s988 = smul.addr %s987, 8
          %s989 = scalar_lea.vmem [#allocation8], %s988
          %990 = dma.done %s986, 128
        $region72: #{tpu_custom_call.1} parent=67 // pred_fallthru
          _
      $region68: #{tpu_custom_call.1} parent=5 // pred_fallthru
        _
    $region6: #{tpu_custom_call.1} parent=1 // loop_footer
      %s24 = sadd.s32 1, %s20
    $region7: #{tpu_custom_call.1} parent=1 // loop_footer_branch
      %19 = sbr.rel target = $region3
    $region8: #{tpu_custom_call.1} parent=1 // loop_exit
      _
    %991 = vsyncpa [#allocation3], 1
    %s992 = scalar_lea.sflag [#allocation3], 1
    %993 = vsyncpa %s992, 1
    %994 = vsyncpa [#allocation6], 1
    %995 = vsyncpa [#allocation4], 1
    %s996 = scalar_lea.sflag [#allocation4], 1
    %997 = vsyncpa %s996, 1

</llo_original>
